<compile_context>
chip_gen: v7x
topology: tpu7x:2x2x1
jax: 0.10.0
libtpu: 0.0.40
codegen_flags: <defaults>
</compile_context>

<pallas_src>
import functools

import jax
import jax.numpy as jnp
from jax.experimental import pallas as pl
from jax.experimental.pallas import tpu as pltpu


def _round_up(x, m):
    return ((x + m - 1) // m) * m


def _vmem_budget():
    """Generation-aware (scoped VMEM limit, per-block byte cap).

    Steady state holds 4 live blocks (in + out, double buffered); keep ~40%
    headroom of physical VMEM for compiler scratch.
    """
    phys = 64 << 20  # conservative default = v7x per-TensorCore VMEM
    try:
        info_fn = getattr(pltpu, "get_tpu_info", None)
        if info_fn is not None:
            reported = int(info_fn().vmem_capacity_bytes)
            if reported >= (16 << 20):
                phys = reported
    except Exception:
        pass
    vmem_limit = min(int(phys * 0.6), 100 << 20)
    block_cap = max(vmem_limit // 6, 1 << 20)
    return vmem_limit, block_cap


def _poly_kernel_folded(x_ref, o_ref, *, count, order, c_used, tile_rows):
    # x_ref / o_ref: (tile_rows, tile_hw) blocks of the (N*C_used, H*W) array.
    x = x_ref[...]
    if order == 1:
        o_ref[...] = x
        return
    row0 = pl.program_id(0) * tile_rows
    ch = (jax.lax.broadcasted_iota(jnp.int32, x_ref.shape, 0) + row0) % c_used
    p = x
    result = x  # exponent-1 rows
    for e in range(2, order + 1):
        p = p * x
        # Ascending thresholds: later (higher-exponent) rows overwrite.
        result = jnp.where(ch >= (e - 1) * count, p, result)
    o_ref[...] = result


def _poly_kernel_batched(x_ref, o_ref, *, count, order, c_used):
    # x_ref: (c_read, tile_hw) with c_read >= c_used; o_ref: (c_used, tile_hw).
    x = x_ref[...][:c_used, :]
    if order == 1:
        o_ref[...] = x
        return
    ch = jax.lax.broadcasted_iota(jnp.int32, x.shape, 0)
    p = x
    result = x
    for e in range(2, order + 1):
        p = p * x
        result = jnp.where(ch >= (e - 1) * count, p, result)
    o_ref[...] = result


def poly_activation(x_nchw, count, order):
    """x_nchw: (N, C, H, W) with C >= count*order. Returns (N, count*order, H, W)."""
    n, c, h, w = x_nchw.shape
    c_used = count * order
    assert c >= c_used, "input must have at least count*order channels"
    hw = h * w
    dtype = x_nchw.dtype
    dtype_bytes = jnp.dtype(dtype).itemsize
    row_mult = 8 * max(1, 4 // dtype_bytes)  # sublane packing: 8 f32 / 16 bf16 / 32 i8

    vmem_limit, block_cap = _vmem_budget()
    compiler_params = pltpu.CompilerParams(
        dimension_semantics=("parallel", "parallel"),
        vmem_limit_bytes=vmem_limit,
    )

    if c == c_used:
        # Fold batch into the sublane axis (free reshape for contiguous NCHW).
        rows = n * c_used
        x2 = x_nchw.reshape(rows, hw)

        # Row tile: full rows if they fit with the minimum (128) lane tile,
        # otherwise the largest row_mult multiple that does.
        rows_fit = block_cap // (128 * dtype_bytes)
        if _round_up(rows, row_mult) <= rows_fit or rows <= row_mult:
            tile_rows = rows  # full extent -> always legal
        else:
            tile_rows = max(row_mult, (rows_fit // row_mult) * row_mult)
        tile_rows_pad = _round_up(tile_rows, row_mult)

        # Lane tile: largest 128-multiple under the per-block byte cap.
        max_hw = max(128, (block_cap // (tile_rows_pad * dtype_bytes)) // 128 * 128)
        tile_hw = min(max_hw, _round_up(hw, 128))
        if tile_hw >= hw:
            tile_hw = hw  # full extent: lane-dense and legal

        # Keep >= 2 grid steps for v7x megacore when the problem allows it.
        if pl.cdiv(rows, tile_rows) * pl.cdiv(hw, tile_hw) < 2 and hw > 128:
            tile_hw = _round_up(pl.cdiv(hw, 2), 128)

        grid = (pl.cdiv(rows, tile_rows), pl.cdiv(hw, tile_hw))
        kernel = functools.partial(
            _poly_kernel_folded, count=count, order=order,
            c_used=c_used, tile_rows=tile_rows)
        out = pl.pallas_call(
            kernel,
            out_shape=jax.ShapeDtypeStruct((rows, hw), dtype),
            grid=grid,
            in_specs=[pl.BlockSpec((tile_rows, tile_hw), lambda r, t: (r, t))],
            out_specs=pl.BlockSpec((tile_rows, tile_hw), lambda r, t: (r, t)),
            compiler_params=compiler_params,
        )(x2)
        return out.reshape(n, c_used, h, w)

    # c > c_used: read ceil-to-row_mult channels straight from the full input
    # (no wrapper-side slice pass); write only the first c_used channels.
    x3 = x_nchw.reshape(n, c, hw)
    c_read = min(c, _round_up(c_used, row_mult))
    c_read_pad = _round_up(c_read, row_mult)

    max_hw = max(128, (block_cap // (c_read_pad * dtype_bytes)) // 128 * 128)
    tile_hw = min(max_hw, _round_up(hw, 128))
    if tile_hw >= hw:
        tile_hw = hw
    if n * pl.cdiv(hw, tile_hw) < 2 and hw > 128:
        tile_hw = _round_up(pl.cdiv(hw, 2), 128)

    grid = (n, pl.cdiv(hw, tile_hw))
    kernel = functools.partial(
        _poly_kernel_batched, count=count, order=order, c_used=c_used)
    out = pl.pallas_call(
        kernel,
        out_shape=jax.ShapeDtypeStruct((n, c_used, hw), dtype),
        grid=grid,
        in_specs=[pl.BlockSpec((None, c_read, tile_hw), lambda b, t: (b, 0, t))],
        out_specs=pl.BlockSpec((None, c_used, tile_hw), lambda b, t: (b, 0, t)),
        compiler_params=compiler_params,
    )(x3)
    return out.reshape(n, c_used, h, w)


def _reference(x_nchw, count, order):
    outs = []
    for i in range(1, order + 1):
        outs.append(x_nchw[:, (i - 1) * count: i * count] ** i)
    return jnp.concatenate(outs, axis=1)


if __name__ == "__main__":
    count = 4
    order = 3
    n, h, w = 2, 16, 16
    c = count * order  # 12

    key = jax.random.PRNGKey(0)
    x = jax.random.normal(key, (n, c, h, w), dtype=jnp.float32)

    y = poly_activation(x, count, order)
    y = jax.block_until_ready(y)

    y_ref = _reference(x, count, order)
    assert y.shape == (n, count * order, h, w)
    assert jnp.allclose(y, y_ref, atol=1e-6, rtol=1e-6)

    # Also exercise the C > count*order path (channel over-read, no wrapper slice).
    c_big = c + 5
    x_big = jax.random.normal(jax.random.PRNGKey(0), (n, c_big, h, w), dtype=jnp.float32)
    y2 = jax.block_until_ready(poly_activation(x_big, count, order))
    assert jnp.allclose(y2, _reference(x_big, count, order), atol=1e-6, rtol=1e-6)

    print("KERNEL_OK")
</pallas_src>

<mosaic_0001>
module attributes {stable_mosaic.version = 11 : i64} {
  func.func @_poly_kernel_folded(%arg0: i32, %arg1: i32, %arg2: memref<24x128xf32, #tpu.memory_space<vmem>>, %arg3: memref<24x128xf32, #tpu.memory_space<vmem>>) attributes {dimension_semantics = [#tpu.dimension_semantics<parallel>, #tpu.dimension_semantics<parallel>], iteration_bounds = array<i64: 1, 2>, scalar_prefetch = 0 : i64, scratch_operands = 0 : i64, tpu.core_type = #tpu.core_type<tc>, window_params = [{transform_indices = @transform_0, window_bounds = array<i64: 24, 128>}, {transform_indices = @transform_1, window_bounds = array<i64: 24, 128>}]} {
    %c0 = arith.constant 0 : index
    %c0_0 = arith.constant 0 : index
    %0 = vector.load %arg2[%c0, %c0_0] : memref<24x128xf32, #tpu.memory_space<vmem>>, vector<24x128xf32>
    %c24_i32 = arith.constant 24 : i32
    %1 = arith.muli %arg0, %c24_i32 : i32
    %2 = tpu.iota {dimensions = array<i32: 0>} : vector<24x128xi32>
    %3 = vector.broadcast %1 : i32 to vector<24x128xi32>
    %4 = arith.addi %2, %3 : vector<24x128xi32>
    %c12_i32 = arith.constant 12 : i32
    %c0_i32 = arith.constant 0 : i32
    %5 = arith.cmpi eq, %c12_i32, %c0_i32 : i32
    %c1_i32 = arith.constant 1 : i32
    %6 = arith.select %5, %c1_i32, %c12_i32 : i32
    %7 = vector.broadcast %6 : i32 to vector<24x128xi32>
    %8 = arith.remsi %4, %7 : vector<24x128xi32>
    %c0_i32_1 = arith.constant 0 : i32
    %9 = vector.broadcast %c0_i32_1 : i32 to vector<24x128xi32>
    %10 = arith.cmpi ne, %8, %9 : vector<24x128xi32>
    %c0_i32_2 = arith.constant 0 : i32
    %11 = vector.broadcast %c0_i32_2 : i32 to vector<24x128xi32>
    %12 = arith.cmpi slt, %8, %11 : vector<24x128xi32>
    %c0_i32_3 = arith.constant 0 : i32
    %13 = arith.cmpi slt, %6, %c0_i32_3 : i32
    %14 = vector.broadcast %13 : i1 to vector<24x128xi1>
    %15 = vector.broadcast %14 : vector<24x128xi1> to vector<24x128xi1>
    %16 = arith.xori %12, %15 : vector<24x128xi1>
    %17 = arith.andi %16, %10 : vector<24x128xi1>
    %18 = vector.broadcast %6 : i32 to vector<24x128xi32>
    %19 = arith.addi %8, %18 : vector<24x128xi32>
    %20 = arith.select %17, %19, %8 : vector<24x128xi1>, vector<24x128xi32>
    %21 = arith.mulf %0, %0 : vector<24x128xf32>
    %c4_i32 = arith.constant 4 : i32
    %22 = vector.broadcast %c4_i32 : i32 to vector<24x128xi32>
    %23 = arith.cmpi sge, %20, %22 : vector<24x128xi32>
    %24 = arith.select %23, %21, %0 : vector<24x128xi1>, vector<24x128xf32>
    %25 = arith.mulf %21, %0 : vector<24x128xf32>
    %c8_i32 = arith.constant 8 : i32
    %26 = vector.broadcast %c8_i32 : i32 to vector<24x128xi32>
    %27 = arith.cmpi sge, %20, %26 : vector<24x128xi32>
    %28 = arith.select %27, %25, %24 : vector<24x128xi1>, vector<24x128xf32>
    %c0_4 = arith.constant 0 : index
    %c0_5 = arith.constant 0 : index
    %29 = vector.load %arg3[%c0_4, %c0_5] : memref<24x128xf32, #tpu.memory_space<vmem>>, vector<24x128xf32>
    tpu.vector_store %arg3[%c0_4, %c0_5], %28 {strides = array<i32>} : memref<24x128xf32, #tpu.memory_space<vmem>>, vector<24x128xf32>,
    return
  }
  func.func @transform_0(%arg0: i32, %arg1: i32) -> (i32, i32) {
    %c0_i32 = arith.constant 0 : i32
    return %arg0, %arg1 : i32, i32
  }
  func.func @transform_1(%arg0: i32, %arg1: i32) -> (i32, i32) {
    %c0_i32 = arith.constant 0 : i32
    return %arg0, %arg1 : i32, i32
  }
}

</mosaic_0001>

<llo_original>
// kernel: tpu_custom_call.1
$region0: #{tpu_custom_call.1}
  #allocation0 [shape = 'u32[]', space=smem, size = 0x4, offset = 0x4, fixed_abs, tag = 'smem constant byte address 0x4 - core index']
  #allocation1 [shape = 'u32[144,128]{1,0:T(1,128)}', space=vmem, size = 0x12000, scoped, tag = 'internal scratch']
  %s0 = inlined_call_operand.hbm [shape: f32[24,256], index: 0, kind: input, shape index: {}]
  %s1 = inlined_call_operand.hbm [shape: f32[24,256], index: 1, kind: output, shape index: {}]
  %s2 = sld [smem:[#allocation0]]
  $region41: #{tpu_custom_call.1} parent=0
    _
  %s4 = ssub.s32 1, %s2
  %s5 = scalar_select 0, %s4, %s2
  $region1: #{tpu_custom_call.1} parent=0
    #allocation2 [shape = 'u8[24576]{0}', space=vmem, size = 0x6000, scoped, tag = 'input window, operand 0']
    #allocation3 [shape = 's32[2]{0}', space=sflag, size = 0x8, scoped, tag = 'scoped memory for tpu_custom_call.1']
    #allocation4 [shape = 's32[2]{0}', space=sflag, size = 0x8, scoped, tag = 'scoped memory for tpu_custom_call.1']
    #allocation5 [shape = 'u8[24576]{0}', space=vmem, size = 0x6000, scoped, tag = 'output window, operand 0']
    %6 = vsyncpa [#allocation3], 0
    %s7 = scalar_lea.sflag [#allocation3], 1
    %8 = vsyncpa %s7, 0
    %9 = vsyncpa [#allocation4], 0
    %s10 = scalar_lea.sflag [#allocation4], 1
    %11 = vsyncpa %s10, 0
    loop: start=0, step=1, limit=4
    $region2: #{tpu_custom_call.1} parent=1 // loop_pre_header
      _
    $region3: #{tpu_custom_call.1} parent=1 // loop_header
      %s13 = sphi 0, %s17
      %p14 = scmp.ge.s32.totalorder %s13, 4
      %s20 = sphi 0, %s32
      %s21 = sphi 0, %s28
      %s22 = sphi 0, %s20
      %s23 = sphi 0, %s21
      %s24 = sphi 0, %s22
      %s25 = sphi 0, %s23
      %s37 = sphi 0, %s39
      %s40 = sphi 0, %s37
      %s41 = sphi 0, %s40
      %s57 = sphi 0, %s41
      %s65 = sphi 0, %s67
      %s68 = sphi 0, %s65
      %s69 = sphi 0, %s68
      %s85 = sphi 0, %s69
    $region4: #{tpu_custom_call.1} parent=1 // loop_header_branch
      %16 = sbr.rel (%p14) target = $region8
    $region5: #{tpu_custom_call.1} parent=1 // loop_body
      %s18 = ssub.s32 %s13, 1
      %s19 = ssub.s32 %s13, 2
      %s26 = sadd.s32 1, %s21
      %p27 = scmp.ge.s32.totalorder %s26, 2
      %s28 = scalar_select %p27, 0, %s26
      %s29 = sadd.s32 1, %s20
      %s30 = scalar_select %p27, %s29, %s20
      %p31 = scmp.ge.s32.totalorder %s30, 1
      %s32 = scalar_select %p31, 0, %s30
      %s33 = ssub.s32 %s20, %s32
      %s34 = ssub.s32 %s21, %s28
      %s35 = sor.u32 %s33, %s34
      %p36 = scmp.eq.s32.totalorder %s35, 0
      %s38 = sadd.s32 %s37, 1
      %s39 = scalar_select %p36, %s37, %s38
      %p42 = pneg %p36
      %p43 = scmp.eq.s32.totalorder %s13, 1
      %p44 = por %p42, %p43
      %p45 = scmp.ne.s32.totalorder %s37, %s40
      %p46 = scmp.eq.s32.totalorder %s13, 0
      %p47 = por %p45, %p46
      %p48 = scmp.ne.s32.totalorder %s37, %s40
      %p49 = scmp.eq.s32.totalorder %s18, 1
      %p50 = por %p48, %p49
      %p51 = scmp.ne.s32.totalorder %s40, %s41
      %p52 = scmp.eq.s32.totalorder %s18, 0
      %p53 = por %p51, %p52
      %p54 = scmp.ne.s32.totalorder %s40, %s41
      %p55 = scmp.eq.s32.totalorder %s19, 1
      %p56 = por %p54, %p55
      %p58 = scmp.ne.s32.totalorder %s41, %s57
      %p59 = scmp.eq.s32.totalorder %s19, 0
      %p60 = por %p58, %p59
      %s61 = ssub.s32 %s20, %s32
      %s62 = ssub.s32 %s21, %s28
      %s63 = sor.u32 %s61, %s62
      %p64 = scmp.eq.s32.totalorder %s63, 0
      %s66 = sadd.s32 %s65, 1
      %s67 = scalar_select %p64, %s65, %s66
      %p70 = pneg %p64
      %p71 = scmp.eq.s32.totalorder %s13, 1
      %p72 = por %p70, %p71
      %p73 = scmp.ne.s32.totalorder %s65, %s68
      %p74 = scmp.eq.s32.totalorder %s13, 0
      %p75 = por %p73, %p74
      %p76 = scmp.ne.s32.totalorder %s65, %s68
      %p77 = scmp.eq.s32.totalorder %s18, 1
      %p78 = por %p76, %p77
      %p79 = scmp.ne.s32.totalorder %s68, %s69
      %p80 = scmp.eq.s32.totalorder %s18, 0
      %p81 = por %p79, %p80
      %p82 = scmp.ne.s32.totalorder %s68, %s69
      %p83 = scmp.eq.s32.totalorder %s19, 1
      %p84 = por %p82, %p83
      %p86 = scmp.ne.s32.totalorder %s69, %s85
      %p87 = scmp.eq.s32.totalorder %s19, 0
      %p88 = por %p86, %p87
      %p89 = scmp.le.s32.totalorder 1, %s13
      %p90 = scmp.lt.s32.totalorder %s13, 3
      %p91 = pnand %p89, %p90
      %p92 = pneg %p91
      // Predicated region
      $region9: #{tpu_custom_call.1} parent=5 // pred_check
        _
      $region10: #{tpu_custom_call.1} parent=5 // pred_check_branch
        %94 = sbr.rel (%p91) target = $region12
      $region11: #{tpu_custom_call.1} parent=5 // pred_region
        %s95 = ssub.s32 %s13, 1
      $region12: #{tpu_custom_call.1} parent=5 // pred_fallthru
        _
      %p96 = scmp.lt.s32.totalorder %s13, 2
      // Predicated region
      $region13: #{tpu_custom_call.1} parent=5 // pred_check
        %p97 = pneg %p96
      $region14: #{tpu_custom_call.1} parent=5 // pred_check_branch
        %99 = sbr.rel (%p97) target = $region16
      $region15: #{tpu_custom_call.1} parent=5 // pred_region
        // Predicated region
        $region17: #{tpu_custom_call.1} parent=15 // pred_check
          %p100 = pneg %p47
        $region18: #{tpu_custom_call.1} parent=15 // pred_check_branch
          %102 = sbr.rel (%p100) target = $region20
        $region19: #{tpu_custom_call.1} parent=15 // pred_region
          %s103 = sand.u32 %s37, 1
          %s104 = scalar_lea.sflag [#allocation3], %s103
          %s105 = sand.u32 %s37, 1
          %s106 = smul.addr %s105, 24
          %s107 = scalar_lea.vmem [#allocation2], %s106
          %s108 = smul.u32 3, %s20
          %s110 = ssub.s32 384, 384
          %111 = vsyncadd %s104, %s110
          %s112 = smul.addr %s108, 2
          %s113 = sadd.s32 %s21, %s112
          %s114 = smul.addr %s113, 128
          %s115 = scalar_lea.hbm %s0, %s114
          %s116 = sshll.u32 %s107, 4
          %s117 = int_to_ptr.vmem [resolvable:$true] %s116
          %122 = dma.hbm_to_vmem [thread:$0]  %s115, 384, %s117, %s104, 256, 128, 8
        $region20: #{tpu_custom_call.1} parent=15 // pred_fallthru
          _
      $region16: #{tpu_custom_call.1} parent=5 // pred_fallthru
        _
      %p123 = scmp.le.s32.totalorder 1, %s13
      %p124 = scmp.lt.s32.totalorder %s13, 3
      %p125 = pnand %p123, %p124
      %p126 = pneg %p125
      // Predicated region
      $region21: #{tpu_custom_call.1} parent=5 // pred_check
        _
      $region22: #{tpu_custom_call.1} parent=5 // pred_check_branch
        %128 = sbr.rel (%p125) target = $region24
      $region23: #{tpu_custom_call.1} parent=5 // pred_region
        %s129 = ssub.s32 %s13, 1
        %s130 = sand.u32 %s40, 1
        %s131 = scalar_lea.sflag [#allocation3], %s130
        %s132 = sand.u32 %s40, 1
        %s133 = smul.addr %s132, 24
        %s134 = scalar_lea.vmem [#allocation2], %s133
        // Predicated region
        $region25: #{tpu_custom_call.1} parent=23 // pred_check
          %p135 = pneg %p53
        $region26: #{tpu_custom_call.1} parent=23 // pred_check_branch
          %137 = sbr.rel (%p135) target = $region28
        $region27: #{tpu_custom_call.1} parent=23 // pred_region
          %138 = dma.done %s131, 384
        $region28: #{tpu_custom_call.1} parent=23 // pred_fallthru
          _
        %s139 = sand.u32 %s40, 1
        %s140 = scalar_lea.sflag [#allocation3], %s139
        %s141 = sand.u32 %s40, 1
        %s142 = smul.addr %s141, 24
        %s143 = scalar_lea.vmem [#allocation2], %s142
        %p144 = pneg %p53
        %p145 = pneg %p50
        %p146 = pneg %p81
        %p147 = pneg %p78
        %s148 = sand.u32 %s68, 1
        %s149 = scalar_lea.sflag [#allocation4], %s148
        %s150 = sand.u32 %s68, 1
        %s151 = smul.addr %s150, 24
        %s152 = scalar_lea.vmem [#allocation5], %s151
        %s153 = smul.u32 3, %s22
        %s154 = smul.u32 3, %s22
        %v155 = vld [vmem:[%s134] sm:$0xff]
        %v156 = vld [vmem:[%s134 + $0x8] sm:$0xff]
        %v157 = vld [vmem:[%s134 + $0x10] sm:$0xff]
        %s158 = smul.u32 %s22, 24
        %v159 = vlaneseq
        %v160 = vshrl.u32 %v159, 7
        %v161 = vadd.s32 %v160, 8
        %v162 = vadd.s32 %v160, 16
        %v163 = vstv %s158
        %v164 = vadd.s32 %v160, %v163
        %v165 = vadd.s32 %v161, %v163
        %v166 = vadd.s32 %v162, %v163
        %vm167 = vcmp.lt.s32.totalorder %v164, 0
        %v168 = vsub.s32 0, %v164
        %v169 = vsel %vm167, %v168, %v164
        %v170 = vmul.u32.u64.compose %v169, 2863311531
        %v171 = vextract.low.u32 %v170
        %v172 = vextract.high.u32 %v170
        %v173 = vshrl.u32 %v172, 3
        %v174 = vmul.u32 %v173, 12
        %v175 = vsub.s32 %v169, %v174
        %v176 = vsub.s32 0, %v175
        %v177 = vsel %vm167, %v176, %v175
        %vm178 = vcmp.lt.s32.totalorder %v165, 0
        %v179 = vsub.s32 0, %v165
        %v180 = vsel %vm178, %v179, %v165
        %v181 = vmul.u32.u64.compose %v180, 2863311531
        %v182 = vextract.low.u32 %v181
        %v183 = vextract.high.u32 %v181
        %v184 = vshrl.u32 %v183, 3
        %v185 = vmul.u32 %v184, 12
        %v186 = vsub.s32 %v180, %v185
        %v187 = vsub.s32 0, %v186
        %v188 = vsel %vm178, %v187, %v186
        %vm189 = vcmp.lt.s32.totalorder %v166, 0
        %v190 = vsub.s32 0, %v166
        %v191 = vsel %vm189, %v190, %v166
        %v192 = vmul.u32.u64.compose %v191, 2863311531
        %v193 = vextract.low.u32 %v192
        %v194 = vextract.high.u32 %v192
        %v195 = vshrl.u32 %v194, 3
        %v196 = vmul.u32 %v195, 12
        %v197 = vsub.s32 %v191, %v196
        %v198 = vsub.s32 0, %v197
        %v199 = vsel %vm189, %v198, %v197
        %vm200 = vcmp.ne.s32.totalorder %v177, 0
        %vm201 = vcmp.ne.s32.totalorder %v188, 0
        %vm202 = vcmp.ne.s32.totalorder %v199, 0
        %vm203 = vcmp.lt.s32.totalorder %v177, 0
        %vm204 = vcmp.lt.s32.totalorder %v188, 0
        %vm205 = vcmp.lt.s32.totalorder %v199, 0
        %vm206 = vmand %vm203, %vm200
        %vm207 = vmand %vm204, %vm201
        %vm208 = vmand %vm205, %vm202
        %v209 = vadd.s32 %v177, 12
        %v210 = vadd.s32 %v188, 12
        %v211 = vadd.s32 %v199, 12
        %v212 = vsel %vm206, %v209, %v177
        %v213 = vsel %vm207, %v210, %v188
        %v214 = vsel %vm208, %v211, %v199
        %v215 = vmul.f32 %v155, %v155
        %v216 = vmul.f32 %v156, %v156
        %v217 = vmul.f32 %v157, %v157
        %vm218 = vcmp.ge.s32.totalorder %v212, 4
        %vm219 = vcmp.ge.s32.totalorder %v213, 4
        %vm220 = vcmp.ge.s32.totalorder %v214, 4
        %v221 = vsel %vm218, %v215, %v155
        %v222 = vsel %vm219, %v216, %v156
        %v223 = vsel %vm220, %v217, %v157
        %v224 = vmul.f32 %v215, %v155
        %v225 = vmul.f32 %v216, %v156
        %v226 = vmul.f32 %v217, %v157
        %vm227 = vcmp.ge.s32.totalorder %v212, 8
        %vm228 = vcmp.ge.s32.totalorder %v213, 8
        %vm229 = vcmp.ge.s32.totalorder %v214, 8
        %v230 = vsel %vm227, %v224, %v221
        %v231 = vsel %vm228, %v225, %v222
        %v232 = vsel %vm229, %v226, %v223
        %233 = vst [vmem:[%s152] sm:$0xff] %v230
        %234 = vst [vmem:[%s152 + $0x8] sm:$0xff] %v231
        %235 = vst [vmem:[%s152 + $0x10] sm:$0xff] %v232
        %s236 = sand.u32 %s68, 1
        %s237 = scalar_lea.sflag [#allocation4], %s236
        %s238 = sand.u32 %s68, 1
        %s239 = smul.addr %s238, 24
        %s240 = scalar_lea.vmem [#allocation5], %s239
        // Predicated region
        $region29: #{tpu_custom_call.1} parent=23 // pred_check
          %p241 = pneg %p78
        $region30: #{tpu_custom_call.1} parent=23 // pred_check_branch
          %243 = sbr.rel (%p241) target = $region32
        $region31: #{tpu_custom_call.1} parent=23 // pred_region
          %s244 = smul.u32 3, %s22
          %s246 = ssub.s32 384, 384
          %247 = vsyncadd %s237, %s246
          %s248 = smul.addr %s244, 2
          %s249 = sadd.s32 %s23, %s248
          %s250 = smul.addr %s249, 128
          %s251 = scalar_lea.hbm %s1, %s250
          %s252 = sshll.u32 %s240, 4
          %s253 = int_to_ptr.vmem [resolvable:$true] %s252
          %258 = dma.vmem_to_hbm [thread:$0]  %s253, 384, %s251, %s237, 128, 256, 8
        $region32: #{tpu_custom_call.1} parent=23 // pred_fallthru
          _
      $region24: #{tpu_custom_call.1} parent=5 // pred_fallthru
        _
      %p259 = scmp.le.s32.totalorder 2, %s13
      // Predicated region
      $region33: #{tpu_custom_call.1} parent=5 // pred_check
        %p260 = pneg %p259
      $region34: #{tpu_custom_call.1} parent=5 // pred_check_branch
        %262 = sbr.rel (%p260) target = $region36
      $region35: #{tpu_custom_call.1} parent=5 // pred_region
        %s263 = ssub.s32 %s13, 2
        // Predicated region
        $region37: #{tpu_custom_call.1} parent=35 // pred_check
          %p264 = pneg %p84
        $region38: #{tpu_custom_call.1} parent=35 // pred_check_branch
          %266 = sbr.rel (%p264) target = $region40
        $region39: #{tpu_custom_call.1} parent=35 // pred_region
          %s267 = sand.u32 %s69, 1
          %s268 = scalar_lea.sflag [#allocation4], %s267
          %s269 = sand.u32 %s69, 1
          %s270 = smul.addr %s269, 24
          %s271 = scalar_lea.vmem [#allocation5], %s270
          %272 = dma.done %s268, 384
        $region40: #{tpu_custom_call.1} parent=35 // pred_fallthru
          _
      $region36: #{tpu_custom_call.1} parent=5 // pred_fallthru
        _
    $region6: #{tpu_custom_call.1} parent=1 // loop_footer
      %s17 = sadd.s32 1, %s13
    $region7: #{tpu_custom_call.1} parent=1 // loop_footer_branch
      %12 = sbr.rel target = $region3
    $region8: #{tpu_custom_call.1} parent=1 // loop_exit
      _
    %273 = vsyncpa [#allocation3], 1
    %s274 = scalar_lea.sflag [#allocation3], 1
    %275 = vsyncpa %s274, 1
    %276 = vsyncpa [#allocation4], 1
    %s277 = scalar_lea.sflag [#allocation4], 1
    %278 = vsyncpa %s277, 1

</llo_original>
